<compile_context>
chip_gen: v7x
topology: tpu7x:2x2x1
jax: 0.10.0
libtpu: 0.0.40
codegen_flags: <defaults>
</compile_context>

<pallas_src>
import jax
import jax.numpy as jnp
import numpy as np
from jax import lax
from jax.experimental import pallas as pl
from jax.experimental.pallas import tpu as pltpu


def _span_extractor_kernel(maxw_ref, spans_ref, seq_ref, w_ref, b_ref, out_ref):
    """One grid step = (batch element b, span tile n).

    maxw_ref  : (1,)        int32  SMEM   batch-global max span width (scalar prefetch)
    spans_ref : (1, TN, 2)  int32  VMEM   [...,0]=inclusive start, [...,1]=inclusive end
    seq_ref   : (1, L, D)   native VMEM   sequence block (NOT upcast: one bf16/f32 HBM pass)
    w_ref     : (D, 1)      f32    VMEM   global-attention weight
    b_ref     : (1, 1)      f32    VMEM   global-attention bias
    out_ref   : (1, TN, D)  native VMEM
    """
    seq = seq_ref[0]                                   # (L, D) native dtype (bf16 stays bf16)
    spans = spans_ref[0]                               # (TN, 2) int32
    L = seq.shape[0]

    starts = spans[:, 0:1]                             # (TN, 1)
    ends = spans[:, 1:2]                               # (TN, 1)
    w_total = maxw_ref[0].astype(jnp.float32)          # max span width over the whole batch

    # --- global attention logits, FUSED into the kernel: the sequence is read from HBM once ---
    w_col = w_ref[...].astype(seq.dtype)               # feed the MXU in the sequence dtype
    logits = jnp.dot(seq, w_col, preferred_element_type=jnp.float32) + b_ref[...]   # (L, 1) f32

    # One shared shift per tile instead of a per-span max: the shift cancels exactly in the
    # fused normalization below (only rounding changes) and drops the transcendental count
    # from TN*L to L per tile. Clamping at 0 mirrors the reference's masked-softmax max
    # whenever zero-logit pad slots exist. Pathological case: a span whose logits all sit
    # > ~87 below the sequence max underflows to a zero row (guarded against NaN below).
    m_shift = jnp.maximum(jnp.max(logits, axis=0, keepdims=True), 0.0)   # (1, 1)
    e_col = jnp.exp(logits - m_shift)                                    # (L, 1) f32
    e_cast = e_col.astype(seq.dtype)

    # --- span membership over the sequence (l ranges over [0, L): index clipping is implicit) ---
    l_iota = lax.broadcasted_iota(jnp.int32, (1, L), 1)                  # (1, L), not materialized
    member = (l_iota >= starts) & (l_iota <= ends)                       # (TN, L) bool
    member_c = member.astype(seq.dtype)                                  # 0/1: exact in bf16 too

    # Valid-position count per span from arithmetic on (TN, 1) ints -- no (TN, L) reduction.
    num_valid = jnp.maximum(
        jnp.minimum(ends, L - 1) - jnp.maximum(starts, 0) + 1, 0
    ).astype(jnp.float32)                                                # (TN, 1)
    num_invalid = w_total - num_valid                  # zero-logit pad slots of the (N, W) view

    # --- both contractions on the MXU; sequence stays untouched in its native dtype ---
    seq_w = seq * e_cast                                                  # rows scaled by exp(.)
    s_sum = jnp.dot(member_c, e_cast, preferred_element_type=jnp.float32)     # (TN, 1)
    out_raw = jnp.dot(member_c, seq_w, preferred_element_type=jnp.float32)    # (TN, D)

    # AllenNLP masked_softmax + renormalization fused into ONE denominator:
    #   p = exp(logit - m) / (S*(1+1e-13) + 1e-13*num_invalid*exp(-m))
    # == softmax(logits*mask)*mask, then divide by (sum + 1e-13). Saves a second lane reduce
    # and a second full (TN, L) pass.
    denom = s_sum * (1.0 + 1e-13) + num_invalid * (1e-13 * jnp.exp(-m_shift))
    denom = jnp.maximum(denom, 1e-37)   # 0/0 guard; reachable only in the underflow case above
    # NOTE: pl.reciprocal(denom, approx=True) is cheaper for bf16 production use; exact divide
    # is kept here so the f32 path matches the reference at ~1e-5.
    out_ref[0] = (out_raw * (1.0 / denom)).astype(out_ref.dtype)


def self_attentive_span_extractor(sequence_tensor, span_indices, weight, bias,
                                  span_indices_mask=None):
    """Pallas TPU implementation of SelfAttentiveSpanExtractor.forward.

    sequence_tensor : (B, L, D) float (f32 or bf16 -- kept in its native dtype end to end)
    span_indices    : (B, N, 2) int   inclusive (start, end)
    weight          : (D, 1)          (= torch Linear(D, 1).weight.T)
    bias            : (1, 1)
    """
    B, L, D = sequence_tensor.shape
    N = span_indices.shape[1]
    in_dtype = sequence_tensor.dtype

    starts = span_indices[..., 0].astype(jnp.int32)
    ends = span_indices[..., 1].astype(jnp.int32)

    # Batch-global max span width as a DEVICE scalar (SMEM scalar prefetch): no host sync,
    # no recompile per distinct width. It only enters the masked-softmax padding term.
    max_width = (jnp.max(ends - starts) + 1).astype(jnp.int32).reshape((1,))

    # Lane-dense feature dim: pad D to a multiple of 128 (a no-op for typical model widths).
    d_pad = -(-D // 128) * 128
    if d_pad != D:
        seq_in = jnp.pad(sequence_tensor, ((0, 0), (0, 0), (0, d_pad - D)))
        w_in = jnp.pad(weight.astype(jnp.float32), ((0, d_pad - D), (0, 0)))
    else:
        seq_in = sequence_tensor
        w_in = weight.astype(jnp.float32)
    b_in = jnp.asarray(bias, dtype=jnp.float32).reshape(1, 1)

    # Span tiling: pad num_spans to a sublane multiple, tiles of up to 256 spans. Padded spans
    # use (start=0, end=-1): empty membership -> all-zero weights -> zero output rows.
    n_pad = -(-N // 8) * 8
    if n_pad <= 256:
        tn = n_pad
    else:
        tn = 256
        n_pad = -(-n_pad // tn) * tn
    if n_pad != N:
        pad = n_pad - N
        starts = jnp.pad(starts, ((0, 0), (0, pad)), constant_values=0)
        ends = jnp.pad(ends, ((0, 0), (0, pad)), constant_values=-1)
    spans = jnp.stack([starts, ends], axis=-1)          # single (B, n_pad, 2) int32 operand

    # VMEM budget: ~75% of physical per generation (v5e/v6e: 96 MiB, v7x: 48 MiB).
    try:
        vmem_cap = pltpu.get_tpu_info().vmem_capacity_bytes
    except Exception:
        vmem_cap = 64 * 1024 * 1024
    vmem_limit = int(min(vmem_cap * 3 // 4, 100 * 1024 * 1024))

    # TODO(synk): for extreme L*D on v7x (64 MiB VMEM) the double-buffered sequence block may
    # still not fit; a D-tiled variant would need a two-pass logit/softmax split.
    out = pl.pallas_call(
        _span_extractor_kernel,
        out_shape=jax.ShapeDtypeStruct((B, n_pad, d_pad), in_dtype),
        grid_spec=pltpu.PrefetchScalarGridSpec(
            num_scalar_prefetch=1,
            grid=(B, n_pad // tn),
            in_specs=[
                pl.BlockSpec((1, tn, 2), lambda b, n, mw: (b, n, 0)),      # spans (start, end)
                pl.BlockSpec((1, L, d_pad), lambda b, n, mw: (b, 0, 0)),   # sequence, native dtype
                pl.BlockSpec((d_pad, 1), lambda b, n, mw: (0, 0)),         # attention weight
                pl.BlockSpec((1, 1), lambda b, n, mw: (0, 0)),             # attention bias
            ],
            out_specs=pl.BlockSpec((1, tn, d_pad), lambda b, n, mw: (b, n, 0)),
        ),
        compiler_params=pltpu.CompilerParams(
            # batch axis "parallel" (megacore shards over b, each core re-uses its sequence
            # block across its span tiles); span-tile axis "arbitrary".
            dimension_semantics=("parallel", "arbitrary"),
            vmem_limit_bytes=vmem_limit,
        ),
    )(max_width, spans, seq_in, w_in, b_in)

    out = out[:, :N, :D]
    if span_indices_mask is not None:
        out = out * span_indices_mask[..., None].astype(out.dtype)
    return out


def _reference(sequence_tensor, span_indices, weight, bias, span_indices_mask=None):
    """Pure-JAX reference reproducing the torch semantics (exact f32 elementwise math)."""
    B, L, D = sequence_tensor.shape
    logits = (sequence_tensor * weight[:, 0][None, None, :]).sum(-1, keepdims=True) + bias[0, 0]
    concat = jnp.concatenate([sequence_tensor, logits], axis=-1)       # (B, L, D+1)
    starts = span_indices[..., 0].astype(jnp.int32)
    ends = span_indices[..., 1].astype(jnp.int32)
    widths = ends - starts
    W = int(jax.device_get(jnp.max(widths))) + 1
    offsets = jnp.arange(W, dtype=jnp.int32)[None, None, :]            # (1, 1, W)
    mask = offsets <= widths[..., None]
    raw = starts[..., None] + offsets
    mask = mask & (raw < L) & (raw >= 0)
    idx = raw * mask
    batch_idx = jnp.arange(B)[:, None, None]
    gathered = concat[batch_idx, idx, :]                               # (B, N, W, D+1)
    span_emb = gathered[..., :-1]
    span_logits = gathered[..., -1]
    mask_f = mask.astype(jnp.float32)
    p = jax.nn.softmax(span_logits * mask_f, axis=-1) * mask_f
    p = p / (p.sum(-1, keepdims=True) + 1e-13)
    out = (p[..., None] * span_emb).sum(axis=2)
    if span_indices_mask is not None:
        out = out * span_indices_mask[..., None].astype(out.dtype)
    return out


if __name__ == "__main__":
    B, L, D, N = 2, 16, 32, 5
    key = jax.random.PRNGKey(0)
    k_seq, k_w, k_b, k_start, k_width = jax.random.split(key, 5)

    sequence_tensor = jax.random.normal(k_seq, (B, L, D), dtype=jnp.float32)

    # Deterministic Linear(input_dim, 1) parameters (synthetic init).
    weight = jax.random.normal(k_w, (D, 1), dtype=jnp.float32) * 0.1
    bias = jax.random.normal(k_b, (1, 1), dtype=jnp.float32) * 0.1

    starts = jax.random.randint(k_start, (B, N), 0, L - 4)
    widths = jax.random.randint(k_width, (B, N), 0, 4)
    ends = jnp.minimum(starts + widths, L - 1)
    span_indices = jnp.stack([starts, ends], axis=-1).astype(jnp.int32)   # (B, N, 2)

    fwd = jax.jit(self_attentive_span_extractor)   # fully traceable: no host sync inside

    # f32 path: tight check against the exact reference.
    out = jax.block_until_ready(fwd(sequence_tensor, span_indices, weight, bias))
    ref = _reference(sequence_tensor, span_indices, weight, bias)
    assert out.shape == (B, N, D)
    assert np.allclose(np.asarray(out), np.asarray(ref), atol=5e-5, rtol=5e-5), (
        "f32 mismatch vs reference")

    # bf16 path (native-dtype sequence end-to-end, bf16 MXU feed): loose smoke check.
    seq_bf16 = sequence_tensor.astype(jnp.bfloat16)
    out_bf16 = jax.block_until_ready(fwd(seq_bf16, span_indices, weight, bias))
    assert out_bf16.dtype == jnp.bfloat16
    ref_bf16 = _reference(seq_bf16.astype(jnp.float32), span_indices, weight, bias)
    assert np.allclose(np.asarray(out_bf16.astype(jnp.float32)), np.asarray(ref_bf16),
                       atol=1e-1, rtol=1e-1), "bf16 mismatch vs reference"

    print("KERNEL_OK")
</pallas_src>

<mosaic_0001>
module attributes {stable_mosaic.version = 11 : i64} {
  func.func @_span_extractor_kernel(%arg0: i32, %arg1: i32, %arg2: memref<1xi32, #tpu.memory_space<smem>>, %arg3: memref<1x8x2xi32, #tpu.memory_space<vmem>>, %arg4: memref<1x16x128xf32, #tpu.memory_space<vmem>>, %arg5: memref<128x1xf32, #tpu.memory_space<vmem>>, %arg6: memref<1x1xf32, #tpu.memory_space<vmem>>, %arg7: memref<1x8x128xf32, #tpu.memory_space<vmem>>) attributes {dimension_semantics = [#tpu.dimension_semantics<parallel>, #tpu.dimension_semantics<arbitrary>], iteration_bounds = array<i64: 2, 1>, scalar_prefetch = 1 : i64, scratch_operands = 0 : i64, tpu.core_type = #tpu.core_type<tc>, window_params = [{transform_indices = @transform_0, window_bounds = array<i64: 1, 8, 2>}, {transform_indices = @transform_1, window_bounds = array<i64: 1, 16, 128>}, {pipeline_mode = #tpu.pipeline_mode<synchronous>, transform_indices = @transform_2, window_bounds = array<i64: 128, 1>}, {pipeline_mode = #tpu.pipeline_mode<synchronous>, transform_indices = @transform_3, window_bounds = array<i64: 1, 1>}, {transform_indices = @transform_4, window_bounds = array<i64: 1, 8, 128>}]} {
    %c0 = arith.constant 0 : index
    %c0_0 = arith.constant 0 : index
    %c0_1 = arith.constant 0 : index
    %0 = vector.load %arg4[%c0, %c0_0, %c0_1] : memref<1x16x128xf32, #tpu.memory_space<vmem>>, vector<1x16x128xf32>
    %1 = vector.shape_cast %0 : vector<1x16x128xf32> to vector<16x128xf32>
    %c0_2 = arith.constant 0 : index
    %c0_3 = arith.constant 0 : index
    %c0_4 = arith.constant 0 : index
    %2 = vector.load %arg3[%c0_2, %c0_3, %c0_4] : memref<1x8x2xi32, #tpu.memory_space<vmem>>, vector<1x8x2xi32>
    %3 = vector.shape_cast %2 : vector<1x8x2xi32> to vector<8x2xi32>
    %4 = vector.extract_strided_slice %3 {offsets = [0, 0], sizes = [8, 1], strides = [1, 1]} : vector<8x2xi32> to vector<8x1xi32>
    %5 = vector.extract_strided_slice %3 {offsets = [0, 1], sizes = [8, 1], strides = [1, 1]} : vector<8x2xi32> to vector<8x1xi32>
    %c0_5 = arith.constant 0 : index
    %6 = memref.load %arg2[%c0_5] : memref<1xi32, #tpu.memory_space<smem>>
    %7 = arith.sitofp %6 : i32 to f32
    %c0_6 = arith.constant 0 : index
    %c0_7 = arith.constant 0 : index
    %8 = vector.load %arg5[%c0_6, %c0_7] : memref<128x1xf32, #tpu.memory_space<vmem>>, vector<128x1xf32>
    %cst = arith.constant dense<0.000000e+00> : vector<16x1xf32>
    %9 = tpu.matmul %1, %8, %cst {dimension_numbers = #tpu.dot_dimension_numbers<[1], [0], [0], [1], [0, 0, 1, 1], [], []>} : vector<16x128xf32>, vector<128x1xf32>, vector<16x1xf32> -> vector<16x1xf32>
    %c0_8 = arith.constant 0 : index
    %c0_9 = arith.constant 0 : index
    %10 = vector.load %arg6[%c0_8, %c0_9] : memref<1x1xf32, #tpu.memory_space<vmem>>, vector<1x1xf32>
    %11 = vector.broadcast %10 : vector<1x1xf32> to vector<16x1xf32>
    %12 = arith.addf %9, %11 : vector<16x1xf32>
    %cst_10 = arith.constant dense<0xFF800000> : vector<1xf32>
    %13 = vector.multi_reduction <maximumf>, %12, %cst_10 [0] : vector<16x1xf32> to vector<1xf32>
    %14 = vector.shape_cast %13 : vector<1xf32> to vector<1x1xf32>
    %cst_11 = arith.constant 0.000000e+00 : f32
    %15 = vector.broadcast %cst_11 : f32 to vector<1x1xf32>
    %16 = arith.maximumf %14, %15 : vector<1x1xf32>
    %17 = vector.broadcast %16 : vector<1x1xf32> to vector<16x1xf32>
    %18 = arith.subf %12, %17 : vector<16x1xf32>
    %19 = math.exp %18 : vector<16x1xf32>
    %20 = tpu.iota {dimensions = array<i32: 1>} : vector<1x16xi32>
    %21 = vector.broadcast %20 : vector<1x16xi32> to vector<8x16xi32>
    %22 = vector.broadcast %4 : vector<8x1xi32> to vector<8x16xi32>
    %23 = arith.cmpi sge, %21, %22 : vector<8x16xi32>
    %24 = vector.broadcast %20 : vector<1x16xi32> to vector<8x16xi32>
    %25 = vector.broadcast %5 : vector<8x1xi32> to vector<8x16xi32>
    %26 = arith.cmpi sle, %24, %25 : vector<8x16xi32>
    %27 = arith.andi %23, %26 : vector<8x16xi1>
    %28 = arith.extui %27 : vector<8x16xi1> to vector<8x16xi32>
    %29 = arith.sitofp %28 : vector<8x16xi32> to vector<8x16xf32>
    %c15_i32 = arith.constant 15 : i32
    %30 = vector.broadcast %c15_i32 : i32 to vector<8x1xi32>
    %31 = arith.minsi %5, %30 : vector<8x1xi32>
    %c0_i32 = arith.constant 0 : i32
    %32 = vector.broadcast %c0_i32 : i32 to vector<8x1xi32>
    %33 = arith.maxsi %4, %32 : vector<8x1xi32>
    %34 = arith.subi %31, %33 : vector<8x1xi32>
    %c1_i32 = arith.constant 1 : i32
    %35 = vector.broadcast %c1_i32 : i32 to vector<8x1xi32>
    %36 = arith.addi %34, %35 : vector<8x1xi32>
    %c0_i32_12 = arith.constant 0 : i32
    %37 = vector.broadcast %c0_i32_12 : i32 to vector<8x1xi32>
    %38 = arith.maxsi %36, %37 : vector<8x1xi32>
    %39 = arith.sitofp %38 : vector<8x1xi32> to vector<8x1xf32>
    %40 = vector.broadcast %7 : f32 to vector<8x1xf32>
    %41 = arith.subf %40, %39 : vector<8x1xf32>
    %42 = vector.broadcast %19 : vector<16x1xf32> to vector<16x128xf32>
    %43 = arith.mulf %1, %42 : vector<16x128xf32>
    %cst_13 = arith.constant dense<0.000000e+00> : vector<8x1xf32>
    %44 = tpu.matmul %29, %19, %cst_13 {dimension_numbers = #tpu.dot_dimension_numbers<[1], [0], [0], [1], [0, 0, 1, 1], [], []>} : vector<8x16xf32>, vector<16x1xf32>, vector<8x1xf32> -> vector<8x1xf32>
    %cst_14 = arith.constant dense<0.000000e+00> : vector<8x128xf32>
    %45 = tpu.matmul %29, %43, %cst_14 {dimension_numbers = #tpu.dot_dimension_numbers<[1], [0], [0], [1], [0, 0, 1, 1], [], []>} : vector<8x16xf32>, vector<16x128xf32>, vector<8x128xf32> -> vector<8x128xf32>
    %cst_15 = arith.constant 1.000000e+00 : f32
    %46 = vector.broadcast %cst_15 : f32 to vector<8x1xf32>
    %47 = arith.mulf %44, %46 : vector<8x1xf32>
    %cst_16 = arith.constant 0.000000e+00 : f32
    %48 = vector.broadcast %cst_16 : f32 to vector<1x1xf32>
    %49 = arith.subf %48, %16 : vector<1x1xf32>
    %50 = math.exp %49 : vector<1x1xf32>
    %cst_17 = arith.constant 9.99999982E-14 : f32
    %51 = vector.broadcast %cst_17 : f32 to vector<1x1xf32>
    %52 = arith.mulf %51, %50 : vector<1x1xf32>
    %53 = vector.broadcast %52 : vector<1x1xf32> to vector<8x1xf32>
    %54 = arith.mulf %41, %53 : vector<8x1xf32>
    %55 = arith.addf %47, %54 : vector<8x1xf32>
    %cst_18 = arith.constant 9.99999991E-38 : f32
    %56 = vector.broadcast %cst_18 : f32 to vector<8x1xf32>
    %57 = arith.maximumf %55, %56 : vector<8x1xf32>
    %cst_19 = arith.constant 1.000000e+00 : f32
    %58 = vector.broadcast %cst_19 : f32 to vector<8x1xf32>
    %59 = arith.divf %58, %57 : vector<8x1xf32>
    %60 = vector.broadcast %59 : vector<8x1xf32> to vector<8x128xf32>
    %61 = arith.mulf %45, %60 : vector<8x128xf32>
    %c0_20 = arith.constant 0 : index
    %c0_21 = arith.constant 0 : index
    %c0_22 = arith.constant 0 : index
    %62 = vector.load %arg7[%c0_20, %c0_21, %c0_22] : memref<1x8x128xf32, #tpu.memory_space<vmem>>, vector<1x8x128xf32>
    %63 = vector.shape_cast %62 : vector<1x8x128xf32> to vector<8x128xf32>
    %64 = vector.shape_cast %61 : vector<8x128xf32> to vector<1x8x128xf32>
    tpu.vector_store %arg7[%c0_20, %c0_21, %c0_22], %64 {strides = array<i32>} : memref<1x8x128xf32, #tpu.memory_space<vmem>>, vector<1x8x128xf32>,
    return
  }
  func.func @transform_0(%arg0: i32, %arg1: i32, %arg2: memref<1xi32, #tpu.memory_space<smem>>) -> (i32, i32, i32) {
    %c0_i32 = arith.constant 0 : i32
    %c0_i32_0 = arith.constant 0 : i32
    return %arg0, %arg1, %c0_i32 : i32, i32, i32
  }
  func.func @transform_1(%arg0: i32, %arg1: i32, %arg2: memref<1xi32, #tpu.memory_space<smem>>) -> (i32, i32, i32) {
    %c0_i32 = arith.constant 0 : i32
    %c0_i32_0 = arith.constant 0 : i32
    %c0_i32_1 = arith.constant 0 : i32
    return %arg0, %c0_i32, %c0_i32_0 : i32, i32, i32
  }
  func.func @transform_2(%arg0: i32, %arg1: i32, %arg2: memref<1xi32, #tpu.memory_space<smem>>) -> (i32, i32) {
    %c0_i32 = arith.constant 0 : i32
    %c0_i32_0 = arith.constant 0 : i32
    %c0_i32_1 = arith.constant 0 : i32
    return %c0_i32, %c0_i32_0 : i32, i32
  }
  func.func @transform_3(%arg0: i32, %arg1: i32, %arg2: memref<1xi32, #tpu.memory_space<smem>>) -> (i32, i32) {
    %c0_i32 = arith.constant 0 : i32
    %c0_i32_0 = arith.constant 0 : i32
    %c0_i32_1 = arith.constant 0 : i32
    return %c0_i32, %c0_i32_0 : i32, i32
  }
  func.func @transform_4(%arg0: i32, %arg1: i32, %arg2: memref<1xi32, #tpu.memory_space<smem>>) -> (i32, i32, i32) {
    %c0_i32 = arith.constant 0 : i32
    %c0_i32_0 = arith.constant 0 : i32
    return %arg0, %arg1, %c0_i32 : i32, i32, i32
  }
}

</mosaic_0001>

<llo_original>
// kernel: self_attentive_span_extractor.1
$region0: #{self_attentive_span_extractor.1}
  #allocation0 [shape = 'u32[]', space=smem, size = 0x4, offset = 0x4, fixed_abs, tag = 'smem constant byte address 0x4 - core index']
  #allocation1 [shape = 'u32[144,128]{1,0:T(1,128)}', space=vmem, size = 0x12000, scoped, tag = 'internal scratch']
  #allocation2 [shape = 's32[1]{0}', space=sflag, size = 0x4, scoped, tag = 'scoped memory for self_attentive_span_extractor.1']
  #allocation3 [shape = 's32[1]{0:T(128)S(6)}', space=smem, size = 0x200, scoped, tag = 'prefetched SMEM operand 0']
  #allocation4 [shape = 'f32[1,1]{1,0:T(1,128)S(1)}', space=vmem, size = 0x200, scoped, tag = 'scoped memory for self_attentive_span_extractor.1']
  %s0 = inlined_call_operand.<no memory space> [shape: s32[1], index: 0, kind: input, shape index: {}]
  %s1 = inlined_call_operand.vmem [shape: s32[2,8,2], index: 1, kind: input, shape index: {}]
  %s2 = inlined_call_operand.vmem [shape: f32[2,16,128], index: 2, kind: input, shape index: {}]
  %s3 = inlined_call_operand.vmem [shape: f32[128,1], index: 3, kind: input, shape index: {}]
  %s4 = inlined_call_operand.<no memory space> [shape: f32[1,1], index: 4, kind: input, shape index: {}]
  %s5 = inlined_call_operand.vmem [shape: f32[2,8,128], index: 5, kind: output, shape index: {}]
  %s6 = sld [smem:[#allocation0]]
  $region49: #{self_attentive_span_extractor.1} parent=0
    _
  %s8 = ssub.s32 1, %s6
  %s9 = scalar_select 0, %s8, %s6
  %10 = sst [smem:[#allocation3]] %s0
  %v11 = vstv %s4
  %12 = vst [vmem:[#allocation4] sm:$0x1] %v11
  loop: start=0, step=1, limit=4
  $region2: #{self_attentive_span_extractor.1} parent=0 // loop_pre_header
    _
  $region3: #{self_attentive_span_extractor.1} parent=0 // loop_header
    %s14 = sphi 0, %s18
    %p15 = scmp.ge.s32.totalorder %s14, 4
    %s21 = sphi 0, %s33
    %s22 = sphi 0, %s29
    %s23 = sphi 0, %s21
    %s24 = sphi 0, %s22
    %s25 = sphi 0, %s23
    %s26 = sphi 0, %s24
    %s38 = sphi 0, %s40
    %s41 = sphi 0, %s38
    %s42 = sphi 0, %s41
    %s58 = sphi 0, %s42
    %s64 = sphi 0, %s66
    %s67 = sphi 0, %s64
    %s68 = sphi 0, %s67
    %s84 = sphi 0, %s68
    %s88 = sphi 0, %s88
    %s90 = sphi 0, %s88
    %s91 = sphi 0, %s90
    %s105 = sphi 0, %s91
    %s109 = sphi 0, %s109
    %s111 = sphi 0, %s109
    %s112 = sphi 0, %s111
    %s126 = sphi 0, %s112
    %s134 = sphi 0, %s136
    %s137 = sphi 0, %s134
    %s138 = sphi 0, %s137
    %s154 = sphi 0, %s138
  $region4: #{self_attentive_span_extractor.1} parent=0 // loop_header_branch
    %17 = sbr.rel (%p15) target = $region8
  $region5: #{self_attentive_span_extractor.1} parent=0 // loop_body
    %s19 = ssub.s32 %s14, 1
    %s20 = ssub.s32 %s14, 2
    %s27 = sadd.s32 1, %s22
    %p28 = scmp.ge.s32.totalorder %s27, 1
    %s29 = scalar_select %p28, 0, %s27
    %s30 = sadd.s32 1, %s21
    %s31 = scalar_select %p28, %s30, %s21
    %p32 = scmp.ge.s32.totalorder %s31, 2
    %s33 = scalar_select %p32, 0, %s31
    %s34 = ssub.s32 %s21, %s33
    %s35 = ssub.s32 %s22, %s29
    %s36 = sor.u32 %s34, %s35
    %p37 = scmp.eq.s32.totalorder %s36, 0
    %s39 = sadd.s32 %s38, 1
    %s40 = scalar_select %p37, %s38, %s39
    %p43 = pneg %p37
    %p44 = scmp.eq.s32.totalorder %s14, 1
    %p45 = por %p43, %p44
    %p46 = scmp.ne.s32.totalorder %s38, %s41
    %p47 = scmp.eq.s32.totalorder %s14, 0
    %p48 = por %p46, %p47
    %p49 = scmp.ne.s32.totalorder %s38, %s41
    %p50 = scmp.eq.s32.totalorder %s19, 1
    %p51 = por %p49, %p50
    %p52 = scmp.ne.s32.totalorder %s41, %s42
    %p53 = scmp.eq.s32.totalorder %s19, 0
    %p54 = por %p52, %p53
    %p55 = scmp.ne.s32.totalorder %s41, %s42
    %p56 = scmp.eq.s32.totalorder %s20, 1
    %p57 = por %p55, %p56
    %p59 = scmp.ne.s32.totalorder %s42, %s58
    %p60 = scmp.eq.s32.totalorder %s20, 0
    %p61 = por %p59, %p60
    %s62 = ssub.s32 %s21, %s33
    %p63 = scmp.eq.s32.totalorder %s62, 0
    %s65 = sadd.s32 %s64, 1
    %s66 = scalar_select %p63, %s64, %s65
    %p69 = pneg %p63
    %p70 = scmp.eq.s32.totalorder %s14, 1
    %p71 = por %p69, %p70
    %p72 = scmp.ne.s32.totalorder %s64, %s67
    %p73 = scmp.eq.s32.totalorder %s14, 0
    %p74 = por %p72, %p73
    %p75 = scmp.ne.s32.totalorder %s64, %s67
    %p76 = scmp.eq.s32.totalorder %s19, 1
    %p77 = por %p75, %p76
    %p78 = scmp.ne.s32.totalorder %s67, %s68
    %p79 = scmp.eq.s32.totalorder %s19, 0
    %p80 = por %p78, %p79
    %p81 = scmp.ne.s32.totalorder %s67, %s68
    %p82 = scmp.eq.s32.totalorder %s20, 1
    %p83 = por %p81, %p82
    %p85 = scmp.ne.s32.totalorder %s68, %s84
    %p86 = scmp.eq.s32.totalorder %s20, 0
    %p87 = por %p85, %p86
    %s89 = sadd.s32 %s88, 1
    %p92 = scmp.eq.s32.totalorder %s14, 1
    %p93 = scmp.ne.s32.totalorder %s88, %s90
    %p94 = scmp.eq.s32.totalorder %s14, 0
    %p95 = por %p93, %p94
    %p96 = scmp.ne.s32.totalorder %s88, %s90
    %p97 = scmp.eq.s32.totalorder %s19, 1
    %p98 = por %p96, %p97
    %p99 = scmp.ne.s32.totalorder %s90, %s91
    %p100 = scmp.eq.s32.totalorder %s19, 0
    %p101 = por %p99, %p100
    %p102 = scmp.ne.s32.totalorder %s90, %s91
    %p103 = scmp.eq.s32.totalorder %s20, 1
    %p104 = por %p102, %p103
    %p106 = scmp.ne.s32.totalorder %s91, %s105
    %p107 = scmp.eq.s32.totalorder %s20, 0
    %p108 = por %p106, %p107
    %s110 = sadd.s32 %s109, 1
    %p113 = scmp.eq.s32.totalorder %s14, 1
    %p114 = scmp.ne.s32.totalorder %s109, %s111
    %p115 = scmp.eq.s32.totalorder %s14, 0
    %p116 = por %p114, %p115
    %p117 = scmp.ne.s32.totalorder %s109, %s111
    %p118 = scmp.eq.s32.totalorder %s19, 1
    %p119 = por %p117, %p118
    %p120 = scmp.ne.s32.totalorder %s111, %s112
    %p121 = scmp.eq.s32.totalorder %s19, 0
    %p122 = por %p120, %p121
    %p123 = scmp.ne.s32.totalorder %s111, %s112
    %p124 = scmp.eq.s32.totalorder %s20, 1
    %p125 = por %p123, %p124
    %p127 = scmp.ne.s32.totalorder %s112, %s126
    %p128 = scmp.eq.s32.totalorder %s20, 0
    %p129 = por %p127, %p128
    %s130 = ssub.s32 %s21, %s33
    %s131 = ssub.s32 %s22, %s29
    %s132 = sor.u32 %s130, %s131
    %p133 = scmp.eq.s32.totalorder %s132, 0
    %s135 = sadd.s32 %s134, 1
    %s136 = scalar_select %p133, %s134, %s135
    %p139 = pneg %p133
    %p140 = scmp.eq.s32.totalorder %s14, 1
    %p141 = por %p139, %p140
    %p142 = scmp.ne.s32.totalorder %s134, %s137
    %p143 = scmp.eq.s32.totalorder %s14, 0
    %p144 = por %p142, %p143
    %p145 = scmp.ne.s32.totalorder %s134, %s137
    %p146 = scmp.eq.s32.totalorder %s19, 1
    %p147 = por %p145, %p146
    %p148 = scmp.ne.s32.totalorder %s137, %s138
    %p149 = scmp.eq.s32.totalorder %s19, 0
    %p150 = por %p148, %p149
    %p151 = scmp.ne.s32.totalorder %s137, %s138
    %p152 = scmp.eq.s32.totalorder %s20, 1
    %p153 = por %p151, %p152
    %p155 = scmp.ne.s32.totalorder %s138, %s154
    %p156 = scmp.eq.s32.totalorder %s20, 0
    %p157 = por %p155, %p156
    %p158 = scmp.le.s32.totalorder 1, %s14
    %p159 = scmp.lt.s32.totalorder %s14, 3
    %p160 = pnand %p158, %p159
    %p161 = pneg %p160
    // Predicated region
    $region9: #{self_attentive_span_extractor.1} parent=5 // pred_check
      _
    $region10: #{self_attentive_span_extractor.1} parent=5 // pred_check_branch
      %163 = sbr.rel (%p160) target = $region12
    $region11: #{self_attentive_span_extractor.1} parent=5 // pred_region
      %s164 = ssub.s32 %s14, 1
      // Predicated region
      $region13: #{self_attentive_span_extractor.1} parent=11 // pred_check
        %p165 = pneg %p101
      $region14: #{self_attentive_span_extractor.1} parent=11 // pred_check_branch
        %167 = sbr.rel (%p165) target = $region16
      $region15: #{self_attentive_span_extractor.1} parent=11 // pred_region
        _
      $region16: #{self_attentive_span_extractor.1} parent=11 // pred_fallthru
        _
      // Predicated region
      $region17: #{self_attentive_span_extractor.1} parent=11 // pred_check
        %p168 = pneg %p122
      $region18: #{self_attentive_span_extractor.1} parent=11 // pred_check_branch
        %170 = sbr.rel (%p168) target = $region20
      $region19: #{self_attentive_span_extractor.1} parent=11 // pred_region
        _
      $region20: #{self_attentive_span_extractor.1} parent=11 // pred_fallthru
        _
    $region12: #{self_attentive_span_extractor.1} parent=5 // pred_fallthru
      _
    %p171 = scmp.lt.s32.totalorder %s14, 2
    // Predicated region
    $region21: #{self_attentive_span_extractor.1} parent=5 // pred_check
      %p172 = pneg %p171
    $region22: #{self_attentive_span_extractor.1} parent=5 // pred_check_branch
      %174 = sbr.rel (%p172) target = $region24
    $region23: #{self_attentive_span_extractor.1} parent=5 // pred_region
      // Predicated region
      $region25: #{self_attentive_span_extractor.1} parent=23 // pred_check
        %p175 = pneg %p48
      $region26: #{self_attentive_span_extractor.1} parent=23 // pred_check_branch
        %177 = sbr.rel (%p175) target = $region28
      $region27: #{self_attentive_span_extractor.1} parent=23 // pred_region
        %p178 = scmp.lt.s32.totalorder %s21, 1
        %s179 = scalar_select %p178, %s21, 1
        %p180 = scmp.lt.s32.totalorder %s22, 0
        %s181 = scalar_select %p180, %s22, 0
        %s182 = sadd.s32 %s181, %s179
        %s183 = smul.addr %s182, 8
        %s184 = scalar_lea.vmem %s1, %s183
      $region28: #{self_attentive_span_extractor.1} parent=23 // pred_fallthru
        _
      // Predicated region
      $region29: #{self_attentive_span_extractor.1} parent=23 // pred_check
        %p185 = pneg %p74
      $region30: #{self_attentive_span_extractor.1} parent=23 // pred_check_branch
        %187 = sbr.rel (%p185) target = $region32
      $region31: #{self_attentive_span_extractor.1} parent=23 // pred_region
        %p188 = scmp.lt.s32.totalorder %s21, 1
        %s189 = scalar_select %p188, %s21, 1
        %s190 = smul.addr %s189, 2
        %s191 = smul.addr %s190, 8
        %s192 = scalar_lea.vmem %s2, %s191
      $region32: #{self_attentive_span_extractor.1} parent=23 // pred_fallthru
        _
    $region24: #{self_attentive_span_extractor.1} parent=5 // pred_fallthru
      _
    %p193 = scmp.le.s32.totalorder 1, %s14
    %p194 = scmp.lt.s32.totalorder %s14, 3
    %p195 = pnand %p193, %p194
    %p196 = pneg %p195
    // Predicated region
    $region33: #{self_attentive_span_extractor.1} parent=5 // pred_check
      _
    $region34: #{self_attentive_span_extractor.1} parent=5 // pred_check_branch
      %198 = sbr.rel (%p195) target = $region36
    $region35: #{self_attentive_span_extractor.1} parent=5 // pred_region
      %s199 = ssub.s32 %s14, 1
      %p200 = scmp.lt.s32.totalorder %s23, 1
      %s201 = scalar_select %p200, %s23, 1
      %p202 = scmp.lt.s32.totalorder %s24, 0
      %s203 = scalar_select %p202, %s24, 0
      %s204 = sadd.s32 %s203, %s201
      %s205 = smul.addr %s204, 8
      %s206 = scalar_lea.vmem %s1, %s205
      %p207 = pneg %p54
      %p208 = pneg %p51
      %p209 = scmp.lt.s32.totalorder %s23, 1
      %s210 = scalar_select %p209, %s23, 1
      %s211 = smul.addr %s210, 2
      %s212 = smul.addr %s211, 8
      %s213 = scalar_lea.vmem %s2, %s212
      %p214 = pneg %p80
      %p215 = pneg %p77
      %p216 = pneg %p101
      %p217 = pneg %p98
      %p218 = pneg %p122
      %p219 = pneg %p119
      %p220 = pneg %p150
      %p221 = pneg %p147
      %p222 = scmp.lt.s32.totalorder %s23, 1
      %s223 = scalar_select %p222, %s23, 1
      %p224 = scmp.lt.s32.totalorder %s24, 0
      %s225 = scalar_select %p224, %s24, 0
      %s226 = sadd.s32 %s225, %s223
      %s227 = smul.addr %s226, 8
      %s228 = scalar_lea.vmem %s5, %s227
      %p229 = scmp.lt.s32.totalorder %s23, 1
      %s230 = scalar_select %p229, %s23, 1
      %p231 = scmp.lt.s32.totalorder %s24, 0
      %s232 = scalar_select %p231, %s24, 0
      %s233 = sadd.s32 %s232, %s230
      %s234 = smul.addr %s233, 8
      %s235 = scalar_lea.vmem %s1, %s234
      %p236 = scmp.lt.s32.totalorder %s23, 1
      %s237 = scalar_select %p236, %s23, 1
      %s238 = smul.addr %s237, 2
      %s239 = smul.addr %s238, 8
      %s240 = scalar_lea.vmem %s2, %s239
      %p241 = scmp.lt.s32.totalorder %s23, 1
      %s242 = scalar_select %p241, %s23, 1
      %p243 = scmp.lt.s32.totalorder %s24, 0
      %s244 = scalar_select %p243, %s24, 0
      %s245 = sadd.s32 %s244, %s242
      %s246 = smul.addr %s245, 8
      %s247 = scalar_lea.vmem %s5, %s246
      %v248 = vld [vmem:[%s240] sm:$0xff]
      %v249 = vld [vmem:[%s240 + $0x8] sm:$0xff]
      %v250 = vld [vmem:[%s235] sm:$0xff]
      %s251 = sld [smem:[#allocation3]]
      %s252 = scvt.s32.f32 %s251
      %v253 = vld [vmem:[%s3] sm:$0xff]
      %v254 = vld [vmem:[%s3 + $0x8] sm:$0xff]
      %v255 = vld [vmem:[%s3 + $0x10] sm:$0xff]
      %v256 = vld [vmem:[%s3 + $0x18] sm:$0xff]
      %v257 = vld [vmem:[%s3 + $0x20] sm:$0xff]
      %v258 = vld [vmem:[%s3 + $0x28] sm:$0xff]
      %v259 = vld [vmem:[%s3 + $0x30] sm:$0xff]
      %v260 = vld [vmem:[%s3 + $0x38] sm:$0xff]
      %v261 = vld [vmem:[%s3 + $0x40] sm:$0xff]
      %v262 = vld [vmem:[%s3 + $0x48] sm:$0xff]
      %v263 = vld [vmem:[%s3 + $0x50] sm:$0xff]
      %v264 = vld [vmem:[%s3 + $0x58] sm:$0xff]
      %v265 = vld [vmem:[%s3 + $0x60] sm:$0xff]
      %v266 = vld [vmem:[%s3 + $0x68] sm:$0xff]
      %v267 = vld [vmem:[%s3 + $0x70] sm:$0xff]
      %v268 = vld [vmem:[%s3 + $0x78] sm:$0xff]
      %v269 = vld [vmem:[#allocation4] sm:$0x1]
      %v271 = vlaneseq
      %v272 = vshrl.u32 %v271, 7
      %v273 = vsub.s32 0, %v272
      %v274 = vrot.slane %v269, %v273
      %276 = vmatprep.subr.mxu0 0.0
      %277 = vmatpush1.msra.mxu0 %v253
      %278 = vmatprep.subr.mxu0 0.0
      %279 = vmatpush1.msra.mxu0 %v254
      %280 = vmatprep.subr.mxu0 0.0
      %281 = vmatpush1.msra.mxu0 %v255
      %282 = vmatprep.subr.mxu0 0.0
      %283 = vmatpush1.msra.mxu0 %v256
      %284 = vmatprep.subr.mxu0 0.0
      %285 = vmatpush1.msra.mxu0 %v257
      %286 = vmatprep.subr.mxu0 0.0
      %287 = vmatpush1.msra.mxu0 %v258
      %288 = vmatprep.subr.mxu0 0.0
      %289 = vmatpush1.msra.mxu0 %v259
      %290 = vmatprep.subr.mxu0 0.0
      %291 = vmatpush1.msra.mxu0 %v260
      %292 = vmatprep.subr.mxu0 0.0
      %293 = vmatpush1.msra.mxu0 %v261
      %294 = vmatprep.subr.mxu0 0.0
      %295 = vmatpush1.msra.mxu0 %v262
      %296 = vmatprep.subr.mxu0 0.0
      %297 = vmatpush1.msra.mxu0 %v263
      %298 = vmatprep.subr.mxu0 0.0
      %299 = vmatpush1.msra.mxu0 %v264
      %300 = vmatprep.subr.mxu0 0.0
      %301 = vmatpush1.msra.mxu0 %v265
      %302 = vmatprep.subr.mxu0 0.0
      %303 = vmatpush1.msra.mxu0 %v266
      %304 = vmatprep.subr.mxu0 0.0
      %305 = vmatpush1.msra.mxu0 %v267
      %306 = vmatprep.subr.mxu0 0.0
      %307 = vmatpush1.msra.mxu0 %v268
      %308 = vmatprep.subr.mxu0 0.0
      %309 = vmatpush1.msra.mxu0 0.0
      %310 = vmatprep.subr.mxu0 0.0
      %311 = vmatpush1.msra.mxu0 0.0
      %312 = vmatprep.subr.mxu0 0.0
      %313 = vmatpush1.msra.mxu0 0.0
      %314 = vmatprep.subr.mxu0 0.0
      %315 = vmatpush1.msra.mxu0 0.0
      %316 = vmatprep.subr.mxu0 0.0
      %317 = vmatpush1.msra.mxu0 0.0
      %318 = vmatprep.subr.mxu0 0.0
      %319 = vmatpush1.msra.mxu0 0.0
      %320 = vmatprep.subr.mxu0 0.0
      %321 = vmatpush1.msra.mxu0 0.0
      %322 = vmatprep.subr.mxu0 0.0
      %323 = vmatpush1.msra.mxu0 0.0
      %324 = vmatprep.subr.mxu0 0.0
      %325 = vmatpush1.msra.mxu0 0.0
      %326 = vmatprep.subr.mxu0 0.0
      %327 = vmatpush1.msra.mxu0 0.0
      %328 = vmatprep.subr.mxu0 0.0
      %329 = vmatpush1.msra.mxu0 0.0
      %330 = vmatprep.subr.mxu0 0.0
      %331 = vmatpush1.msra.mxu0 0.0
      %332 = vmatprep.subr.mxu0 0.0
      %333 = vmatpush1.msra.mxu0 0.0
      %334 = vmatprep.subr.mxu0 0.0
      %335 = vmatpush1.msra.mxu0 0.0
      %336 = vmatprep.subr.mxu0 0.0
      %337 = vmatpush1.msra.mxu0 0.0
      %338 = vmatprep.subr.mxu0 0.0
      %339 = vmatpush1.msra.mxu0 0.0
      %340 = vmatprep.mubr.f32.mxu0 0.0
      %341 = vmatmul.mubr.f32.gmra.mrb[0].mxu0 %v248
      %v342 = vpop.f32.mrb[0].mxu0
      %v343 = vadd.f32 %v274, %v342
      %v344 = vpop.f32.mrb[0].mxu0
      %345 = vmatprep.mubr.f32.mxu0 0.0
      %346 = vmatmul.mubr.f32.gmra.mrb[0].mxu0 %v249
      %v347 = vpop.f32.mrb[0].mxu0
      %v348 = vadd.f32 %v274, %v347
      %v349 = vpop.f32.mrb[0].mxu0
      %350 = vdwg.mxu0
      %vm351 = vcmask 7168
      %v352 = vsel %vm351, %v343, -inf
      %v353 = vsel %vm351, %v348, -inf
      %v354 = vmax.f32 %v352, %v353
      %v355 = vrot.slane %v354, 4
      %v356 = vmax.f32 %v354, %v355
      %v357 = vrot.slane %v356, 2
      %v358 = vmax.f32 %v356, %v357
      %v359 = vrot.slane %v358, 1
      %v360 = vmax.f32 %v358, %v359
      %v361 = vmax.f32 %v360, 0.0
      %v362 = vsub.f32 %v343, %v361
      %v363 = vsub.f32 %v348, %v361
      %v364 = vmul.f32 %v362, 1.442695
      %v365 = vpow.pop %v364
      %v366 = vmul.f32 %v363, 1.442695
      %v367 = vpow.pop %v366
      %v368 = vlaneseq
      %v369 = vand.u32 %v368, 127
      %370 = vset.pattern.permute.xlu0 0
      %371 = vperm.xlu0 %370, %v250
      %v372 = vpop.permute.xlu0 %371
      %vm373 = vcmp.ge.s32.totalorder %v369, %v372
      %374 = vset.pattern.permute.xlu0 1
      %375 = vperm.xlu0 %374, %v250
      %v376 = vpop.permute.xlu0 %375
      %vm377 = vcmp.le.s32.totalorder %v369, %v376
      %vm378 = vmand %vm373, %vm377
      %v379 = vsel %vm378, 1, 0
      %v380 = vcvt.s32.f32 %v379
      %vm381 = vcmp.lt.s32.totalorder %v250, 15
      %v382 = vsel %vm381, %v250, 15
      %vm383 = vcmp.gt.s32.totalorder %v250, 0
      %v384 = vsel %vm383, %v250, 0
      %385 = vrot.lane.b32.xlu0 %v384, 1
      %v386 = vpop.permute.xlu0 %385
      %v387 = vsub.s32 %v382, %v386
      %v388 = vadd.s32 %v387, 1
      %vm389 = vcmp.gt.s32.totalorder %v388, 0
      %v390 = vsel %vm389, %v388, 0
      %v391 = vcvt.s32.f32 %v390
      %v392 = vstv %s252
      %v393 = vsub.f32 %v392, %v391
      %395 = vset.pattern.permute.xlu0 0
      %396 = vperm.xlu0 %395, %v365
      %v397 = vpop.permute.xlu0 %396
      %400 = vset.pattern.permute.xlu0 0
      %401 = vperm.xlu0 %400, %v367
      %v402 = vpop.permute.xlu0 %401
      %v404 = vmul.f32 %v248, %v397
      %v405 = vmul.f32 %v249, %v402
      %vm406 = vcmask 130048
      %v408 = vsel %vm406, %v380, 0
      %410 = vmatprep.subr.mxu0 0.0
      %411 = vmatpush1.msra.mxu0 %v404
      %412 = vmatprep.subr.mxu0 0.0
      %413 = vmatpush1.msra.mxu0 %v405
      %414 = vmatprep.subr.mxu0 0.0
      %415 = vmatpush1.msra.mxu0 0.0
      %416 = vmatprep.subr.mxu0 0.0
      %417 = vmatpush1.msra.mxu0 0.0
      %418 = vmatprep.subr.mxu0 0.0
      %419 = vmatpush1.msra.mxu0 0.0
      %420 = vmatprep.subr.mxu0 0.0
      %421 = vmatpush1.msra.mxu0 0.0
      %422 = vmatprep.subr.mxu0 0.0
      %423 = vmatpush1.msra.mxu0 0.0
      %424 = vmatprep.subr.mxu0 0.0
      %425 = vmatpush1.msra.mxu0 0.0
      %426 = vmatprep.subr.mxu0 0.0
      %427 = vmatpush1.msra.mxu0 0.0
      %428 = vmatprep.subr.mxu0 0.0
      %429 = vmatpush1.msra.mxu0 0.0
      %430 = vmatprep.subr.mxu0 0.0
      %431 = vmatpush1.msra.mxu0 0.0
      %432 = vmatprep.subr.mxu0 0.0
      %433 = vmatpush1.msra.mxu0 0.0
      %434 = vmatprep.subr.mxu0 0.0
      %435 = vmatpush1.msra.mxu0 0.0
      %436 = vmatprep.subr.mxu0 0.0
      %437 = vmatpush1.msra.mxu0 0.0
      %438 = vmatprep.subr.mxu0 0.0
      %439 = vmatpush1.msra.mxu0 0.0
      %440 = vmatprep.subr.mxu0 0.0
      %441 = vmatpush1.msra.mxu0 0.0
      %442 = vmatprep.subr.mxu0 0.0
      %443 = vmatpush1.msra.mxu0 0.0
      %444 = vmatprep.subr.mxu0 0.0
      %445 = vmatpush1.msra.mxu0 0.0
      %446 = vmatprep.subr.mxu0 0.0
      %447 = vmatpush1.msra.mxu0 0.0
      %448 = vmatprep.subr.mxu0 0.0
      %449 = vmatpush1.msra.mxu0 0.0
      %450 = vmatprep.subr.mxu0 0.0
      %451 = vmatpush1.msra.mxu0 0.0
      %452 = vmatprep.subr.mxu0 0.0
      %453 = vmatpush1.msra.mxu0 0.0
      %454 = vmatprep.subr.mxu0 0.0
      %455 = vmatpush1.msra.mxu0 0.0
      %456 = vmatprep.subr.mxu0 0.0
      %457 = vmatpush1.msra.mxu0 0.0
      %458 = vmatprep.subr.mxu0 0.0
      %459 = vmatpush1.msra.mxu0 0.0
      %460 = vmatprep.subr.mxu0 0.0
      %461 = vmatpush1.msra.mxu0 0.0
      %462 = vmatprep.subr.mxu0 0.0
      %463 = vmatpush1.msra.mxu0 0.0
      %464 = vmatprep.subr.mxu0 0.0
      %465 = vmatpush1.msra.mxu0 0.0
      %466 = vmatprep.subr.mxu0 0.0
      %467 = vmatpush1.msra.mxu0 0.0
      %468 = vmatprep.subr.mxu0 0.0
      %469 = vmatpush1.msra.mxu0 0.0
      %470 = vmatprep.subr.mxu0 0.0
      %471 = vmatpush1.msra.mxu0 0.0
      %472 = vmatprep.subr.mxu0 0.0
      %473 = vmatpush1.msra.mxu0 0.0
      %474 = vmatprep.mubr.f32.mxu0 0.0
      %475 = vmatmul.mubr.f32.gmra.mrb[0].mxu0 %v408
      %v476 = vpop.f32.mrb[0].mxu0
      %v477 = vadd.f32 0.0, %v476
      %v478 = vpop.f32.mrb[0].mxu0
      %479 = vdwg.mxu0
      %v480 = vsub.f32 0.0, %v361
      %v481 = vmul.f32 %v480, 1.442695
      %v482 = vpow.pop %v481
      %v483 = vmul.f32 %v482, 1e-13
      %485 = vrot.lane.b32.xlu0 %v483, 1
      %v486 = vpop.permute.xlu0 %485
      %v488 = vmul.f32 %v393, %v486
      %490 = vrot.lane.b32.xlu0 %v488, 127
      %v491 = vpop.permute.xlu0 %490
      %493 = vmatprep.subr.mxu0 0.0
      %494 = vmatpush1.msra.mxu0 %v365
      %495 = vmatprep.subr.mxu0 0.0
      %496 = vmatpush1.msra.mxu0 %v367
      %497 = vmatprep.subr.mxu0 0.0
      %498 = vmatpush1.msra.mxu0 0.0
      %499 = vmatprep.subr.mxu0 0.0
      %500 = vmatpush1.msra.mxu0 0.0
      %501 = vmatprep.subr.mxu0 0.0
      %502 = vmatpush1.msra.mxu0 0.0
      %503 = vmatprep.subr.mxu0 0.0
      %504 = vmatpush1.msra.mxu0 0.0
      %505 = vmatprep.subr.mxu0 0.0
      %506 = vmatpush1.msra.mxu0 0.0
      %507 = vmatprep.subr.mxu0 0.0
      %508 = vmatpush1.msra.mxu0 0.0
      %509 = vmatprep.subr.mxu0 0.0
      %510 = vmatpush1.msra.mxu0 0.0
      %511 = vmatprep.subr.mxu0 0.0
      %512 = vmatpush1.msra.mxu0 0.0
      %513 = vmatprep.subr.mxu0 0.0
      %514 = vmatpush1.msra.mxu0 0.0
      %515 = vmatprep.subr.mxu0 0.0
      %516 = vmatpush1.msra.mxu0 0.0
      %517 = vmatprep.subr.mxu0 0.0
      %518 = vmatpush1.msra.mxu0 0.0
      %519 = vmatprep.subr.mxu0 0.0
      %520 = vmatpush1.msra.mxu0 0.0
      %521 = vmatprep.subr.mxu0 0.0
      %522 = vmatpush1.msra.mxu0 0.0
      %523 = vmatprep.subr.mxu0 0.0
      %524 = vmatpush1.msra.mxu0 0.0
      %525 = vmatprep.subr.mxu0 0.0
      %526 = vmatpush1.msra.mxu0 0.0
      %527 = vmatprep.subr.mxu0 0.0
      %528 = vmatpush1.msra.mxu0 0.0
      %529 = vmatprep.subr.mxu0 0.0
      %530 = vmatpush1.msra.mxu0 0.0
      %531 = vmatprep.subr.mxu0 0.0
      %532 = vmatpush1.msra.mxu0 0.0
      %533 = vmatprep.subr.mxu0 0.0
      %534 = vmatpush1.msra.mxu0 0.0
      %535 = vmatprep.subr.mxu0 0.0
      %536 = vmatpush1.msra.mxu0 0.0
      %537 = vmatprep.subr.mxu0 0.0
      %538 = vmatpush1.msra.mxu0 0.0
      %539 = vmatprep.subr.mxu0 0.0
      %540 = vmatpush1.msra.mxu0 0.0
      %541 = vmatprep.subr.mxu0 0.0
      %542 = vmatpush1.msra.mxu0 0.0
      %543 = vmatprep.subr.mxu0 0.0
      %544 = vmatpush1.msra.mxu0 0.0
      %545 = vmatprep.subr.mxu0 0.0
      %546 = vmatpush1.msra.mxu0 0.0
      %547 = vmatprep.subr.mxu0 0.0
      %548 = vmatpush1.msra.mxu0 0.0
      %549 = vmatprep.subr.mxu0 0.0
      %550 = vmatpush1.msra.mxu0 0.0
      %551 = vmatprep.subr.mxu0 0.0
      %552 = vmatpush1.msra.mxu0 0.0
      %553 = vmatprep.subr.mxu0 0.0
      %554 = vmatpush1.msra.mxu0 0.0
      %555 = vmatprep.subr.mxu0 0.0
      %556 = vmatpush1.msra.mxu0 0.0
      %557 = vmatprep.mubr.f32.mxu0 0.0
      %558 = vmatmul.mubr.f32.gmra.mrb[0].mxu0 %v408
      %v559 = vpop.f32.mrb[0].mxu0
      %v560 = vadd.f32 %v491, %v559
      %v561 = vpop.f32.mrb[0].mxu0
      %562 = vdwg.mxu0
      %v563 = vmax.f32 %v560, 1e-37
      %v564 = vrcp.pop %v563
      %v565 = vmul.f32 1.0, %v564
      %567 = vset.pattern.permute.xlu0 0
      %568 = vperm.xlu0 %567, %v565
      %v569 = vpop.permute.xlu0 %568
      %v571 = vmul.f32 %v477, %v569
      %572 = vst [vmem:[%s247] sm:$0xff] %v571
      %p573 = scmp.lt.s32.totalorder %s23, 1
      %s574 = scalar_select %p573, %s23, 1
      %p575 = scmp.lt.s32.totalorder %s24, 0
      %s576 = scalar_select %p575, %s24, 0
      %s577 = sadd.s32 %s576, %s574
      %s578 = smul.addr %s577, 8
      %s579 = scalar_lea.vmem %s5, %s578
      // Predicated region
      $region37: #{self_attentive_span_extractor.1} parent=35 // pred_check
        %p580 = pneg %p147
      $region38: #{self_attentive_span_extractor.1} parent=35 // pred_check_branch
        %582 = sbr.rel (%p580) target = $region40
      $region39: #{self_attentive_span_extractor.1} parent=35 // pred_region
        _
      $region40: #{self_attentive_span_extractor.1} parent=35 // pred_fallthru
        _
    $region36: #{self_attentive_span_extractor.1} parent=5 // pred_fallthru
      _
    %p583 = scmp.le.s32.totalorder 2, %s14
    // Predicated region
    $region41: #{self_attentive_span_extractor.1} parent=5 // pred_check
      %p584 = pneg %p583
    $region42: #{self_attentive_span_extractor.1} parent=5 // pred_check_branch
      %586 = sbr.rel (%p584) target = $region44
    $region43: #{self_attentive_span_extractor.1} parent=5 // pred_region
      %s587 = ssub.s32 %s14, 2
      // Predicated region
      $region45: #{self_attentive_span_extractor.1} parent=43 // pred_check
        %p588 = pneg %p153
      $region46: #{self_attentive_span_extractor.1} parent=43 // pred_check_branch
        %590 = sbr.rel (%p588) target = $region48
      $region47: #{self_attentive_span_extractor.1} parent=43 // pred_region
        %p591 = scmp.lt.s32.totalorder %s25, 1
        %s592 = scalar_select %p591, %s25, 1
        %p593 = scmp.lt.s32.totalorder %s26, 0
        %s594 = scalar_select %p593, %s26, 0
        %s595 = sadd.s32 %s594, %s592
        %s596 = smul.addr %s595, 8
        %s597 = scalar_lea.vmem %s5, %s596
      $region48: #{self_attentive_span_extractor.1} parent=43 // pred_fallthru
        _
    $region44: #{self_attentive_span_extractor.1} parent=5 // pred_fallthru
      _
  $region6: #{self_attentive_span_extractor.1} parent=0 // loop_footer
    %s18 = sadd.s32 1, %s14
  $region7: #{self_attentive_span_extractor.1} parent=0 // loop_footer_branch
    %13 = sbr.rel target = $region3
  $region8: #{self_attentive_span_extractor.1} parent=0 // loop_exit
    _

</llo_original>
